<compile_context>
chip_gen: v5e
topology: v5e:2x2
jax: 0.10.0
libtpu: 0.0.40
codegen_flags: <defaults>
</compile_context>

<pallas_src>
import functools

import jax
import jax.numpy as jnp
from jax.experimental import pallas as pl
from jax.experimental.pallas import tpu as pltpu


def _round_up(x, m):
    return ((x + m - 1) // m) * m


def _nbytes(shape, dtype):
    n = 1
    for s in shape:
        n *= int(s)
    return n * jnp.dtype(dtype).itemsize


def _mlp_readout_kernel(x_ref, w0_ref, b0_ref, w1_ref, b1_ref, w2_ref, b2_ref,
                        o_ref, *, matmul_dtype):
    # Activations stay f32 on the VPU; only the MXU operands are narrowed.
    x = x_ref[...]
    # Layer 0: Linear + ReLU
    h = jnp.dot(x.astype(matmul_dtype), w0_ref[...],
                preferred_element_type=jnp.float32)
    h = jnp.maximum(h + b0_ref[...], 0.0)
    # Layer 1: Linear + ReLU
    h = jnp.dot(h.astype(matmul_dtype), w1_ref[...],
                preferred_element_type=jnp.float32)
    h = jnp.maximum(h + b1_ref[...], 0.0)
    # Layer 2 (final): Linear, no activation
    out = jnp.dot(h.astype(matmul_dtype), w2_ref[...],
                  preferred_element_type=jnp.float32)
    out = out + b2_ref[...]
    o_ref[...] = out.astype(o_ref.dtype)


def mlp_readout(x, params, *, batch_tile=None, matmul_dtype=jnp.bfloat16):
    """Fused MLPReadout forward.  x: (B, input_dim) -> (B, output_dim)."""
    (w0, b0), (w1, b1), (w2, b2) = params
    B, d_in = x.shape
    d0, d1, d_out = w0.shape[1], w1.shape[1], w2.shape[1]

    # --- lane-dense output: pad the final layer to a multiple of 128 lanes ---
    d_out_p = _round_up(max(d_out, 1), 128)
    if d_out_p != d_out:
        w2 = jnp.pad(w2, ((0, 0), (0, d_out_p - d_out)))
        b2 = jnp.pad(b2, ((0, 0), (0, d_out_p - d_out)))

    # --- narrow the MXU operands; keep the biases (VPU adds) in f32 ---------
    w0 = w0.astype(matmul_dtype)
    w1 = w1.astype(matmul_dtype)
    w2 = w2.astype(matmul_dtype)
    b0 = b0.astype(jnp.float32)
    b1 = b1.astype(jnp.float32)
    b2 = b2.astype(jnp.float32)

    # --- batch tiling: size the MXU M dimension, keep the grid > 1 ----------
    sub = 8 if jnp.dtype(x.dtype).itemsize >= 4 else 16
    tb = 256 if batch_tile is None else batch_tile
    tb = max(sub, _round_up(tb, sub))        # satisfy the (8,128) constraint
    tb = min(tb, _round_up(B, sub))          # don't tile past the batch
    grid = (pl.cdiv(B, tb),)                 # ragged last tile is masked

    # Weights / biases are small: give every grid step the full tensor (their
    # block index never changes, so the resident copy is simply re-used).
    full = lambda shape: pl.BlockSpec(shape, lambda i: (0, 0))

    # --- VMEM budget: BlockSpec double-buffers every operand ----------------
    vmem_est = 2 * (
        _nbytes((tb, d_in), x.dtype) + _nbytes((tb, d_out_p), x.dtype)
        + _nbytes(w0.shape, matmul_dtype) + _nbytes(w1.shape, matmul_dtype)
        + _nbytes(w2.shape, matmul_dtype)
        + _nbytes(b0.shape, jnp.float32) + _nbytes(b1.shape, jnp.float32)
        + _nbytes(b2.shape, jnp.float32))
    vmem_est += 4 * tb * (d0 + d1 + d_out_p)         # f32 intermediates
    vmem_limit = int(min(max(2 * vmem_est, 32 * 1024 * 1024),
                         100 * 1024 * 1024))

    # --- advisory cost estimate so XLA overlaps surrounding ops -------------
    flops = 2 * B * (d_in * d0 + d0 * d1 + d1 * d_out_p)
    bytes_accessed = (
        _nbytes(x.shape, x.dtype) + _nbytes((B, d_out_p), x.dtype)
        + _nbytes(w0.shape, matmul_dtype) + _nbytes(w1.shape, matmul_dtype)
        + _nbytes(w2.shape, matmul_dtype)
        + _nbytes(b0.shape, jnp.float32) + _nbytes(b1.shape, jnp.float32)
        + _nbytes(b2.shape, jnp.float32))
    cost = pl.CostEstimate(flops=flops, transcendentals=0,
                           bytes_accessed=bytes_accessed)

    # TODO(synk): for d_in >= 4096, add an "arbitrary" K-tiling grid axis for
    # layer 0 with a VMEM f32 accumulator (and single-buffer the constant
    # weight blocks) so a monolithic w0 never has to sit in v7x's 64 MiB VMEM.

    out_padded = pl.pallas_call(
        functools.partial(_mlp_readout_kernel, matmul_dtype=matmul_dtype),
        out_shape=jax.ShapeDtypeStruct((B, d_out_p), x.dtype),
        grid_spec=pltpu.PrefetchScalarGridSpec(
            num_scalar_prefetch=0,
            grid=grid,
            in_specs=[
                pl.BlockSpec((tb, d_in), lambda i: (i, 0)),   # x tile
                full((d_in, d0)), full((1, d0)),              # layer 0
                full((d0, d1)), full((1, d1)),                # layer 1
                full((d1, d_out_p)), full((1, d_out_p)),      # layer 2
            ],
            out_specs=pl.BlockSpec((tb, d_out_p), lambda i: (i, 0)),
        ),
        compiler_params=pltpu.CompilerParams(
            dimension_semantics=("parallel",),
            vmem_limit_bytes=vmem_limit),
        cost_estimate=cost,
    )(x, w0, b0, w1, b1, w2, b2)

    return out_padded[:, :d_out] if d_out_p != d_out else out_padded


def init_mlp_readout_params(key, input_dim, output_dim, L=2,
                            dtype=jnp.float32):
    """Deterministic synthetic init matching MLPReadout.__init__ shapes.

    Returns a list of (W, b) with W stored as (in, out) (i.e. PyTorch W.T).
    """
    dims = [input_dim // (2 ** ly) for ly in range(L + 1)] + [output_dim]
    params = []
    for ly in range(L + 1):
        key, kw, kb = jax.random.split(key, 3)
        fan_in, fan_out = dims[ly], dims[ly + 1]
        bound = 1.0 / jnp.sqrt(fan_in)
        w = jax.random.uniform(kw, (fan_in, fan_out), dtype,
                               minval=-bound, maxval=bound)
        b = jax.random.uniform(kb, (1, fan_out), dtype,
                               minval=-bound, maxval=bound)
        params.append((w, b))
    return params


def mlp_readout_reference(x, params):
    """Pure-JAX f32 reference of the PyTorch forward."""
    (w0, b0), (w1, b1), (w2, b2) = params
    y = jnp.maximum(x @ w0 + b0, 0.0)
    y = jnp.maximum(y @ w1 + b1, 0.0)
    return y @ w2 + b2


if __name__ == "__main__":
    key = jax.random.PRNGKey(0)
    k_x, k_x2, k_p = jax.random.split(key, 3)

    batch, input_dim, output_dim, L = 8, 32, 4, 2
    x = jax.random.normal(k_x, (batch, input_dim), jnp.float32)
    params = init_mlp_readout_params(k_p, input_dim, output_dim, L=L)
    ref = mlp_readout_reference(x, params)

    # 1) exact f32 MXU path
    out_f32 = jax.block_until_ready(
        mlp_readout(x, params, matmul_dtype=jnp.float32))
    assert out_f32.shape == (batch, output_dim)
    assert jnp.allclose(out_f32, ref, atol=1e-5, rtol=1e-5), "f32 mismatch"

    # 2) default bf16-weight MXU path (f32 accumulation) -> looser tolerance
    out_bf16 = jax.block_until_ready(mlp_readout(x, params))
    assert out_bf16.shape == (batch, output_dim)
    assert jnp.allclose(out_bf16, ref, atol=3e-2, rtol=3e-2), "bf16 mismatch"

    # 3) multi-tile grid with a ragged last batch tile
    batch2 = 40
    x2 = jax.random.normal(k_x2, (batch2, input_dim), jnp.float32)
    ref2 = mlp_readout_reference(x2, params)
    out2 = jax.block_until_ready(
        mlp_readout(x2, params, batch_tile=16, matmul_dtype=jnp.float32))
    assert out2.shape == (batch2, output_dim)
    assert jnp.allclose(out2, ref2, atol=1e-5, rtol=1e-5), "ragged mismatch"

    print("KERNEL_OK")
</pallas_src>

<mosaic_0001>
module attributes {stable_mosaic.version = 11 : i64} {
  func.func @_mlp_readout_kernel(%arg0: i32, %arg1: memref<8x32xf32, #tpu.memory_space<vmem>>, %arg2: memref<32x16xf32, #tpu.memory_space<vmem>>, %arg3: memref<1x16xf32, #tpu.memory_space<vmem>>, %arg4: memref<16x8xf32, #tpu.memory_space<vmem>>, %arg5: memref<1x8xf32, #tpu.memory_space<vmem>>, %arg6: memref<8x128xf32, #tpu.memory_space<vmem>>, %arg7: memref<1x128xf32, #tpu.memory_space<vmem>>, %arg8: memref<8x128xf32, #tpu.memory_space<vmem>>) attributes {dimension_semantics = [#tpu.dimension_semantics<parallel>], iteration_bounds = array<i64: 1>, scalar_prefetch = 0 : i64, scratch_operands = 0 : i64, tpu.core_type = #tpu.core_type<tc>, window_params = [{transform_indices = @transform_0, window_bounds = array<i64: 8, 32>}, {pipeline_mode = #tpu.pipeline_mode<synchronous>, transform_indices = @transform_1, window_bounds = array<i64: 32, 16>}, {pipeline_mode = #tpu.pipeline_mode<synchronous>, transform_indices = @transform_2, window_bounds = array<i64: 1, 16>}, {pipeline_mode = #tpu.pipeline_mode<synchronous>, transform_indices = @transform_3, window_bounds = array<i64: 16, 8>}, {pipeline_mode = #tpu.pipeline_mode<synchronous>, transform_indices = @transform_4, window_bounds = array<i64: 1, 8>}, {pipeline_mode = #tpu.pipeline_mode<synchronous>, transform_indices = @transform_5, window_bounds = array<i64: 8, 128>}, {pipeline_mode = #tpu.pipeline_mode<synchronous>, transform_indices = @transform_6, window_bounds = array<i64: 1, 128>}, {transform_indices = @transform_7, window_bounds = array<i64: 8, 128>}]} {
    %c0 = arith.constant 0 : index
    %c0_0 = arith.constant 0 : index
    %0 = vector.load %arg1[%c0, %c0_0] : memref<8x32xf32, #tpu.memory_space<vmem>>, vector<8x32xf32>
    %c0_1 = arith.constant 0 : index
    %c0_2 = arith.constant 0 : index
    %1 = vector.load %arg2[%c0_1, %c0_2] : memref<32x16xf32, #tpu.memory_space<vmem>>, vector<32x16xf32>
    %cst = arith.constant dense<0.000000e+00> : vector<8x16xf32>
    %2 = tpu.matmul %0, %1, %cst {dimension_numbers = #tpu.dot_dimension_numbers<[1], [0], [0], [1], [0, 0, 1, 1], [], []>} : vector<8x32xf32>, vector<32x16xf32>, vector<8x16xf32> -> vector<8x16xf32>
    %c0_3 = arith.constant 0 : index
    %c0_4 = arith.constant 0 : index
    %3 = vector.load %arg3[%c0_3, %c0_4] : memref<1x16xf32, #tpu.memory_space<vmem>>, vector<1x16xf32>
    %4 = vector.broadcast %3 : vector<1x16xf32> to vector<8x16xf32>
    %5 = arith.addf %2, %4 : vector<8x16xf32>
    %cst_5 = arith.constant 0.000000e+00 : f32
    %6 = vector.broadcast %cst_5 : f32 to vector<8x16xf32>
    %7 = arith.maximumf %5, %6 : vector<8x16xf32>
    %c0_6 = arith.constant 0 : index
    %c0_7 = arith.constant 0 : index
    %8 = vector.load %arg4[%c0_6, %c0_7] : memref<16x8xf32, #tpu.memory_space<vmem>>, vector<16x8xf32>
    %cst_8 = arith.constant dense<0.000000e+00> : vector<8x8xf32>
    %9 = tpu.matmul %7, %8, %cst_8 {dimension_numbers = #tpu.dot_dimension_numbers<[1], [0], [0], [1], [0, 0, 1, 1], [], []>} : vector<8x16xf32>, vector<16x8xf32>, vector<8x8xf32> -> vector<8x8xf32>
    %c0_9 = arith.constant 0 : index
    %c0_10 = arith.constant 0 : index
    %10 = vector.load %arg5[%c0_9, %c0_10] : memref<1x8xf32, #tpu.memory_space<vmem>>, vector<1x8xf32>
    %11 = vector.broadcast %10 : vector<1x8xf32> to vector<8x8xf32>
    %12 = arith.addf %9, %11 : vector<8x8xf32>
    %cst_11 = arith.constant 0.000000e+00 : f32
    %13 = vector.broadcast %cst_11 : f32 to vector<8x8xf32>
    %14 = arith.maximumf %12, %13 : vector<8x8xf32>
    %c0_12 = arith.constant 0 : index
    %c0_13 = arith.constant 0 : index
    %15 = vector.load %arg6[%c0_12, %c0_13] : memref<8x128xf32, #tpu.memory_space<vmem>>, vector<8x128xf32>
    %cst_14 = arith.constant dense<0.000000e+00> : vector<8x128xf32>
    %16 = tpu.matmul %14, %15, %cst_14 {dimension_numbers = #tpu.dot_dimension_numbers<[1], [0], [0], [1], [0, 0, 1, 1], [], []>} : vector<8x8xf32>, vector<8x128xf32>, vector<8x128xf32> -> vector<8x128xf32>
    %c0_15 = arith.constant 0 : index
    %c0_16 = arith.constant 0 : index
    %17 = vector.load %arg7[%c0_15, %c0_16] : memref<1x128xf32, #tpu.memory_space<vmem>>, vector<1x128xf32>
    %18 = vector.broadcast %17 : vector<1x128xf32> to vector<8x128xf32>
    %19 = arith.addf %16, %18 : vector<8x128xf32>
    %c0_17 = arith.constant 0 : index
    %c0_18 = arith.constant 0 : index
    %20 = vector.load %arg8[%c0_17, %c0_18] : memref<8x128xf32, #tpu.memory_space<vmem>>, vector<8x128xf32>
    tpu.vector_store %arg8[%c0_17, %c0_18], %19 {strides = array<i32>} : memref<8x128xf32, #tpu.memory_space<vmem>>, vector<8x128xf32>,
    return
  }
  func.func @transform_0(%arg0: i32) -> (i32, i32) {
    %c0_i32 = arith.constant 0 : i32
    %c0_i32_0 = arith.constant 0 : i32
    return %arg0, %c0_i32 : i32, i32
  }
  func.func @transform_1(%arg0: i32) -> (i32, i32) {
    %c0_i32 = arith.constant 0 : i32
    %c0_i32_0 = arith.constant 0 : i32
    %c0_i32_1 = arith.constant 0 : i32
    return %c0_i32, %c0_i32_0 : i32, i32
  }
  func.func @transform_2(%arg0: i32) -> (i32, i32) {
    %c0_i32 = arith.constant 0 : i32
    %c0_i32_0 = arith.constant 0 : i32
    %c0_i32_1 = arith.constant 0 : i32
    return %c0_i32, %c0_i32_0 : i32, i32
  }
  func.func @transform_3(%arg0: i32) -> (i32, i32) {
    %c0_i32 = arith.constant 0 : i32
    %c0_i32_0 = arith.constant 0 : i32
    %c0_i32_1 = arith.constant 0 : i32
    return %c0_i32, %c0_i32_0 : i32, i32
  }
  func.func @transform_4(%arg0: i32) -> (i32, i32) {
    %c0_i32 = arith.constant 0 : i32
    %c0_i32_0 = arith.constant 0 : i32
    %c0_i32_1 = arith.constant 0 : i32
    return %c0_i32, %c0_i32_0 : i32, i32
  }
  func.func @transform_5(%arg0: i32) -> (i32, i32) {
    %c0_i32 = arith.constant 0 : i32
    %c0_i32_0 = arith.constant 0 : i32
    %c0_i32_1 = arith.constant 0 : i32
    return %c0_i32, %c0_i32_0 : i32, i32
  }
  func.func @transform_6(%arg0: i32) -> (i32, i32) {
    %c0_i32 = arith.constant 0 : i32
    %c0_i32_0 = arith.constant 0 : i32
    %c0_i32_1 = arith.constant 0 : i32
    return %c0_i32, %c0_i32_0 : i32, i32
  }
  func.func @transform_7(%arg0: i32) -> (i32, i32) {
    %c0_i32 = arith.constant 0 : i32
    %c0_i32_0 = arith.constant 0 : i32
    return %arg0, %c0_i32 : i32, i32
  }
}

</mosaic_0001>

<llo_original>
// kernel: tpu_custom_call.1
$region0: #{tpu_custom_call.1}
  #allocation0 [shape = 'u32[]', space=smem, size = 0x4, offset = 0x4, fixed_abs, tag = 'smem constant byte address 0x4 - core index']
  #allocation1 [shape = 'u32[72,128]{1,0:T(1,128)}', space=vmem, size = 0x9000, scoped, tag = 'internal scratch']
  %s0 = inlined_call_operand.vmem [shape: f32[8,32], index: 0, kind: input, shape index: {}]
  %s1 = inlined_call_operand.vmem [shape: f32[32,16], index: 1, kind: input, shape index: {}]
  %s2 = inlined_call_operand.vmem [shape: f32[1,16], index: 2, kind: input, shape index: {}]
  %s3 = inlined_call_operand.vmem [shape: f32[16,8], index: 3, kind: input, shape index: {}]
  %s4 = inlined_call_operand.vmem [shape: f32[1,8], index: 4, kind: input, shape index: {}]
  %s5 = inlined_call_operand.vmem [shape: f32[8,128], index: 5, kind: input, shape index: {}]
  %s6 = inlined_call_operand.vmem [shape: f32[1,128], index: 6, kind: input, shape index: {}]
  %s7 = inlined_call_operand.hbm [shape: f32[8,128], index: 7, kind: output, shape index: {}]
  %s8 = sld [smem:[#allocation0]]
  $region38: #{tpu_custom_call.1} parent=0
    _
  %s10 = ssub.s32 1, %s8
  %s11 = scalar_select 0, %s10, %s8
  $region1: #{tpu_custom_call.1} parent=0
    #allocation2 [shape = 'u8[4096]{0}', space=vmem, size = 0x1000, scoped, tag = 'output window, operand 0, single buffered']
    #allocation3 [shape = 's32[1]{0}', space=sflag, size = 0x4, scoped, tag = 'scoped memory for tpu_custom_call.1']
    %12 = vsyncpa [#allocation3], 0
    // Predicated region
    $region2: #{tpu_custom_call.1} parent=1 // pred_check
      _
    $region3: #{tpu_custom_call.1} parent=1 // pred_check_branch
      %14 = sbr.rel (0) target = $region5
    $region4: #{tpu_custom_call.1} parent=1 // pred_region
      _
    $region5: #{tpu_custom_call.1} parent=1 // pred_fallthru
      _
    // Predicated region
    $region6: #{tpu_custom_call.1} parent=1 // pred_check
      _
    $region7: #{tpu_custom_call.1} parent=1 // pred_check_branch
      %16 = sbr.rel (0) target = $region9
    $region8: #{tpu_custom_call.1} parent=1 // pred_region
      _
    $region9: #{tpu_custom_call.1} parent=1 // pred_fallthru
      _
    // Predicated region
    $region10: #{tpu_custom_call.1} parent=1 // pred_check
      _
    $region11: #{tpu_custom_call.1} parent=1 // pred_check_branch
      %18 = sbr.rel (0) target = $region13
    $region12: #{tpu_custom_call.1} parent=1 // pred_region
      _
    $region13: #{tpu_custom_call.1} parent=1 // pred_fallthru
      _
    // Predicated region
    $region14: #{tpu_custom_call.1} parent=1 // pred_check
      _
    $region15: #{tpu_custom_call.1} parent=1 // pred_check_branch
      %20 = sbr.rel (0) target = $region17
    $region16: #{tpu_custom_call.1} parent=1 // pred_region
      _
    $region17: #{tpu_custom_call.1} parent=1 // pred_fallthru
      _
    // Predicated region
    $region18: #{tpu_custom_call.1} parent=1 // pred_check
      _
    $region19: #{tpu_custom_call.1} parent=1 // pred_check_branch
      %22 = sbr.rel (0) target = $region21
    $region20: #{tpu_custom_call.1} parent=1 // pred_region
      _
    $region21: #{tpu_custom_call.1} parent=1 // pred_fallthru
      _
    // Predicated region
    $region22: #{tpu_custom_call.1} parent=1 // pred_check
      _
    $region23: #{tpu_custom_call.1} parent=1 // pred_check_branch
      %24 = sbr.rel (0) target = $region25
    $region24: #{tpu_custom_call.1} parent=1 // pred_region
      _
    $region25: #{tpu_custom_call.1} parent=1 // pred_fallthru
      _
    // Predicated region
    $region26: #{tpu_custom_call.1} parent=1 // pred_check
      _
    $region27: #{tpu_custom_call.1} parent=1 // pred_check_branch
      %26 = sbr.rel (0) target = $region29
    $region28: #{tpu_custom_call.1} parent=1 // pred_region
      _
    $region29: #{tpu_custom_call.1} parent=1 // pred_fallthru
      _
    %v27 = vld [vmem:[%s0] sm:$0xff]
    %v28 = vld [vmem:[%s1] sm:$0xff]
    %v29 = vld [vmem:[%s1 + $0x8] sm:$0xff]
    %v30 = vld [vmem:[%s1 + $0x10] sm:$0xff]
    %v31 = vld [vmem:[%s1 + $0x18] sm:$0xff]
    %v32 = vld [vmem:[%s2] sm:$0x1]
    %v34 = vperm.slane %v32, 0
    %vm36 = vcmask 261120
    %v38 = vsel %vm36, %v27, 0
    %40 = vmatpush.msra.mxu0 0.0
    %41 = vmatpush.msra.mxu0 0.0
    %42 = vmatpush.msra.mxu0 0.0
    %43 = vmatpush.msra.mxu0 0.0
    %44 = vmatpush.msra.mxu0 0.0
    %45 = vmatpush.msra.mxu0 0.0
    %46 = vmatpush.msra.mxu0 0.0
    %47 = vmatpush.msra.mxu0 0.0
    %48 = vmatpush.msra.mxu0 0.0
    %49 = vmatpush.msra.mxu0 0.0
    %50 = vmatpush.msra.mxu0 0.0
    %51 = vmatpush.msra.mxu0 0.0
    %52 = vmatpush.msra.mxu0 %v31
    %53 = vmatpush.msra.mxu0 %v30
    %54 = vmatpush.msra.mxu0 %v29
    %55 = vmatpush.msra.mxu0 %v28
    %56 = vmatmul.f32.gmra.mxu0 %v38
    %v57 = vpop.f32.mrf.mxu0
    %v58 = vadd.f32 %v34, %v57
    %59 = vdwg.mxu0
    %v60 = vmax.f32 %v58, 0.0
    %v61 = vld [vmem:[%s3] sm:$0xff]
    %v62 = vld [vmem:[%s3 + $0x8] sm:$0xff]
    %v63 = vld [vmem:[%s4] sm:$0x1]
    %v65 = vperm.slane %v63, 0
    %vm67 = vcmask 130048
    %v69 = vsel %vm67, %v60, 0
    %71 = vmatpush.msra.mxu0 0.0
    %72 = vmatpush.msra.mxu0 0.0
    %73 = vmatpush.msra.mxu0 0.0
    %74 = vmatpush.msra.mxu0 0.0
    %75 = vmatpush.msra.mxu0 0.0
    %76 = vmatpush.msra.mxu0 0.0
    %77 = vmatpush.msra.mxu0 0.0
    %78 = vmatpush.msra.mxu0 0.0
    %79 = vmatpush.msra.mxu0 0.0
    %80 = vmatpush.msra.mxu0 0.0
    %81 = vmatpush.msra.mxu0 0.0
    %82 = vmatpush.msra.mxu0 0.0
    %83 = vmatpush.msra.mxu0 0.0
    %84 = vmatpush.msra.mxu0 0.0
    %85 = vmatpush.msra.mxu0 %v62
    %86 = vmatpush.msra.mxu0 %v61
    %87 = vmatmul.f32.gmra.mxu0 %v69
    %v88 = vpop.f32.mrf.mxu0
    %v89 = vadd.f32 %v65, %v88
    %90 = vdwg.mxu0
    %v91 = vmax.f32 %v89, 0.0
    %v92 = vld [vmem:[%s5] sm:$0xff]
    %v93 = vld [vmem:[%s6] sm:$0x1]
    %v95 = vperm.slane %v93, 0
    %vm97 = vcmask 64512
    %v99 = vsel %vm97, %v91, 0
    %101 = vmatpush.msra.mxu0 0.0
    %102 = vmatpush.msra.mxu0 0.0
    %103 = vmatpush.msra.mxu0 0.0
    %104 = vmatpush.msra.mxu0 0.0
    %105 = vmatpush.msra.mxu0 0.0
    %106 = vmatpush.msra.mxu0 0.0
    %107 = vmatpush.msra.mxu0 0.0
    %108 = vmatpush.msra.mxu0 0.0
    %109 = vmatpush.msra.mxu0 0.0
    %110 = vmatpush.msra.mxu0 0.0
    %111 = vmatpush.msra.mxu0 0.0
    %112 = vmatpush.msra.mxu0 0.0
    %113 = vmatpush.msra.mxu0 0.0
    %114 = vmatpush.msra.mxu0 0.0
    %115 = vmatpush.msra.mxu0 0.0
    %116 = vmatpush.msra.mxu0 %v92
    %117 = vmatmul.f32.gmra.mxu0 %v99
    %v118 = vpop.f32.mrf.mxu0
    %v119 = vadd.f32 %v95, %v118
    %120 = vdwg.mxu0
    %121 = vst [vmem:[#allocation2] sm:$0xff] %v119
    // Predicated region
    $region30: #{tpu_custom_call.1} parent=1 // pred_check
      _
    $region31: #{tpu_custom_call.1} parent=1 // pred_check_branch
      %123 = sbr.rel (0) target = $region33
    $region32: #{tpu_custom_call.1} parent=1 // pred_region
      %125 = vsyncadd [#allocation3], 0
      %s127 = sshll.u32 [#allocation2], 4
      %s128 = int_to_ptr.vmem [resolvable:$true] %s127
      %s129 = sshll.u32 %s7, 4
      %s130 = int_to_ptr.hbm [resolvable:$true] %s129
      %132 = dma.vmem_to_hbm [thread:$0]  %s128, 128, %s130, [#allocation3]
    $region33: #{tpu_custom_call.1} parent=1 // pred_fallthru
      _
    // Predicated region
    $region34: #{tpu_custom_call.1} parent=1 // pred_check
      _
    $region35: #{tpu_custom_call.1} parent=1 // pred_check_branch
      %134 = sbr.rel (0) target = $region37
    $region36: #{tpu_custom_call.1} parent=1 // pred_region
      %136 = dma.done [#allocation3], 128
    $region37: #{tpu_custom_call.1} parent=1 // pred_fallthru
      _
    %137 = vsyncpa [#allocation3], 1

</llo_original>
